<compile_context>
chip_gen: v7x
topology: tpu7x:2x2x1
jax: 0.10.0
libtpu: 0.0.40
codegen_flags: <defaults>
</compile_context>

<pallas_src>
import functools

import jax
import jax.numpy as jnp
from jax.experimental import pallas as pl
from jax.experimental.pallas import tpu as pltpu


def _round_up(x, m):
    return ((x + m - 1) // m) * m


def _pick_tile_m(n, c, target_block_bytes=2 * 1024 * 1024):
    """Row-tile size: ~2 MiB input block, multiple of 8, not (much) above N."""
    rows = target_block_bytes // max(1, c * 4)
    rows = max(8, min(int(rows), 4096))
    rows = min(rows, _round_up(n, 8))
    return _round_up(rows, 8)


def _saliency_kernel(x_ref, w_ref, b_ref, o_ref):
    # x_ref: (TM, C) VMEM tile, w_ref: (1, C) VMEM (resident weight row),
    # b_ref: (1, 1) SMEM scalar, o_ref: (TM, 1) VMEM output tile.
    prod = x_ref[...] * w_ref[...]                       # VPU elementwise
    s = jnp.sum(prod, axis=1, keepdims=True)             # XLU lane reduce
    o_ref[...] = (s + b_ref[0, 0]).astype(o_ref.dtype)


@functools.partial(jax.jit, static_argnames=("tile_m",))
def _saliency_linear_call(x, w_row, b, tile_m):
    n, c = x.shape
    grid = (pl.cdiv(n, tile_m),)
    return pl.pallas_call(
        _saliency_kernel,
        out_shape=jax.ShapeDtypeStruct((n, 1), jnp.float32),
        grid_spec=pltpu.PrefetchScalarGridSpec(
            num_scalar_prefetch=0,
            grid=grid,
            in_specs=[
                pl.BlockSpec((tile_m, c), lambda i: (i, 0)),          # x row tile
                pl.BlockSpec((1, c), lambda i: (0, 0)),               # weight row (resident)
                pl.BlockSpec(memory_space=pltpu.MemorySpace.SMEM),    # bias scalar
            ],
            out_specs=pl.BlockSpec((tile_m, 1), lambda i: (i, 0)),
        ),
        compiler_params=pltpu.CompilerParams(
            dimension_semantics=("parallel",),
            vmem_limit_bytes=32 * 1024 * 1024,
        ),
    )(x, w_row, b)


def saliency_linear(x, w_row, b, *, tile_m=None):
    """y = x @ w_row.T + b  (w_row: (1, C), b: (1, 1)) via a Pallas TPU kernel."""
    n, c = x.shape
    if n == 0:
        return jnp.zeros((0, 1), jnp.float32)
    if tile_m is None:
        tile_m = _pick_tile_m(n, c)
    return _saliency_linear_call(x, w_row, b, tile_m)


class SaliencyPredictorPallas:
    """JAX/Pallas port of detectron2's SaliencyPredictor."""

    def __init__(self, in_channels, key):
        # Deterministic synthetic init mirroring c2_xavier_fill
        # (uniform(-a, a) with a = sqrt(3 / fan_in), zero bias).
        a = (3.0 / in_channels) ** 0.5
        self.weight = jax.random.uniform(
            key, (1, in_channels), jnp.float32, minval=-a, maxval=a)
        self.bias = jnp.zeros((1,), jnp.float32)
        # Pre-arranged for the kernel.
        self._w_row = self.weight                     # (1, C) VPU weight row
        self._b = self.bias.reshape(1, 1)             # (1, 1) SMEM scalar

    def __call__(self, x_list):
        if not x_list:
            return []
        sizes = [int(x_.shape[0]) for x_ in x_list]
        nonempty = [x_ for x_ in x_list if x_.shape[0] > 0]
        if not nonempty:
            return [jnp.zeros((0, 1), jnp.float32) for _ in x_list]

        # Fuse the list into a single kernel launch, then split the result.
        x_all = nonempty[0] if len(nonempty) == 1 else jnp.concatenate(nonempty, axis=0)
        y_all = saliency_linear(x_all, self._w_row, self._b)

        y, off = [], 0
        for s in sizes:
            if s == 0:
                y.append(jnp.zeros((0, 1), jnp.float32))
            else:
                y.append(y_all[off:off + s])
                off += s
        return y


if __name__ == "__main__":
    key = jax.random.PRNGKey(0)
    k_w, k_x0, k_x1 = jax.random.split(key, 3)

    in_channels = 32   # cfg.MODEL.RELATION_HEAD.MLP_HEAD_DIM (small demo size)
    model = SaliencyPredictorPallas(in_channels, k_w)

    # Input is a list of per-image relation features: (N_i, C).
    x = [
        jax.random.normal(k_x0, (8, in_channels), jnp.float32),
        jax.random.normal(k_x1, (16, in_channels), jnp.float32),
    ]

    y = model(x)
    y = [jax.block_until_ready(y_) for y_ in y]

    # Check against plain-JAX reference.
    for x_, y_ in zip(x, y):
        ref = x_ @ model.weight.T + model.bias
        assert y_.shape == (x_.shape[0], 1), y_.shape
        assert jnp.allclose(y_, ref, atol=1e-5, rtol=1e-5), float(jnp.max(jnp.abs(y_ - ref)))

    print("KERNEL_OK")
</pallas_src>

<mosaic_0001>
module attributes {stable_mosaic.version = 11 : i64} {
  func.func @_saliency_kernel(%arg0: i32, %arg1: memref<24x32xf32, #tpu.memory_space<vmem>>, %arg2: memref<1x32xf32, #tpu.memory_space<vmem>>, %arg3: memref<1x1xf32, #tpu.memory_space<smem>>, %arg4: memref<24x1xf32, #tpu.memory_space<vmem>>) attributes {dimension_semantics = [#tpu.dimension_semantics<parallel>], iteration_bounds = array<i64: 1>, scalar_prefetch = 0 : i64, scratch_operands = 0 : i64, tpu.core_type = #tpu.core_type<tc>, window_params = [{transform_indices = @transform_0, window_bounds = array<i64: 24, 32>}, {pipeline_mode = #tpu.pipeline_mode<synchronous>, transform_indices = @transform_1, window_bounds = array<i64: 1, 32>}, {transform_indices = @transform_2, window_bounds = array<i64: 1, 1>}, {transform_indices = @transform_3, window_bounds = array<i64: 24, 1>}]} {
    %c0 = arith.constant 0 : index
    %c0_0 = arith.constant 0 : index
    %0 = vector.load %arg1[%c0, %c0_0] : memref<24x32xf32, #tpu.memory_space<vmem>>, vector<24x32xf32>
    %c0_1 = arith.constant 0 : index
    %c0_2 = arith.constant 0 : index
    %1 = vector.load %arg2[%c0_1, %c0_2] : memref<1x32xf32, #tpu.memory_space<vmem>>, vector<1x32xf32>
    %2 = vector.broadcast %1 : vector<1x32xf32> to vector<24x32xf32>
    %3 = arith.mulf %0, %2 : vector<24x32xf32>
    %cst = arith.constant dense<0.000000e+00> : vector<24xf32>
    %4 = vector.multi_reduction <add>, %3, %cst [1] : vector<24x32xf32> to vector<24xf32>
    %5 = vector.shape_cast %4 : vector<24xf32> to vector<24x1xf32>
    %c0_3 = arith.constant 0 : index
    %c0_4 = arith.constant 0 : index
    %6 = memref.load %arg3[%c0_3, %c0_4] : memref<1x1xf32, #tpu.memory_space<smem>>
    %7 = vector.broadcast %6 : f32 to vector<24x1xf32>
    %8 = arith.addf %5, %7 : vector<24x1xf32>
    %c0_5 = arith.constant 0 : index
    %c0_6 = arith.constant 0 : index
    %9 = vector.load %arg4[%c0_5, %c0_6] : memref<24x1xf32, #tpu.memory_space<vmem>>, vector<24x1xf32>
    tpu.vector_store %arg4[%c0_5, %c0_6], %8 {strides = array<i32>} : memref<24x1xf32, #tpu.memory_space<vmem>>, vector<24x1xf32>,
    return
  }
  func.func @transform_0(%arg0: i32) -> (i32, i32) {
    %c0_i32 = arith.constant 0 : i32
    %c0_i32_0 = arith.constant 0 : i32
    return %arg0, %c0_i32 : i32, i32
  }
  func.func @transform_1(%arg0: i32) -> (i32, i32) {
    %c0_i32 = arith.constant 0 : i32
    %c0_i32_0 = arith.constant 0 : i32
    %c0_i32_1 = arith.constant 0 : i32
    return %c0_i32, %c0_i32_0 : i32, i32
  }
  func.func @transform_2(%arg0: i32) -> (i32, i32) {
    %c0_i32 = arith.constant 0 : i32
    %c0_i32_0 = arith.constant 0 : i32
    %c0_i32_1 = arith.constant 0 : i32
    return %c0_i32, %c0_i32_0 : i32, i32
  }
  func.func @transform_3(%arg0: i32) -> (i32, i32) {
    %c0_i32 = arith.constant 0 : i32
    %c0_i32_0 = arith.constant 0 : i32
    return %arg0, %c0_i32 : i32, i32
  }
}

</mosaic_0001>

<llo_original>
// kernel: _saliency_linear_call.1
$region0: #{_saliency_linear_call.1}
  #allocation0 [shape = 'u32[]', space=smem, size = 0x4, offset = 0x4, fixed_abs, tag = 'smem constant byte address 0x4 - core index']
  #allocation1 [shape = 'u32[144,128]{1,0:T(1,128)}', space=vmem, size = 0x12000, scoped, tag = 'internal scratch']
  #allocation2 [shape = 'f32[1,1]{1,0:T(1,128)S(6)}', space=smem, size = 0x200, scoped, tag = 'scoped memory for _saliency_linear_call.1']
  %s0 = inlined_call_operand.hbm [shape: f32[24,32], index: 0, kind: input, shape index: {}]
  %s1 = inlined_call_operand.vmem [shape: f32[1,32], index: 1, kind: input, shape index: {}]
  %s2 = inlined_call_operand.<no memory space> [shape: f32[1,1], index: 2, kind: input, shape index: {}]
  %s3 = inlined_call_operand.vmem [shape: f32[24,1], index: 3, kind: output, shape index: {}]
  %s4 = sld [smem:[#allocation0]]
  $region26: #{_saliency_linear_call.1} parent=0
    _
  %s6 = ssub.s32 1, %s4
  %s7 = scalar_select 0, %s6, %s4
  %8 = sst [smem:[#allocation2]] %s2
  $region1: #{_saliency_linear_call.1} parent=0
    #allocation3 [shape = 'u8[12288]{0}', space=vmem, size = 0x3000, scoped, tag = 'input window, operand 0, single buffered']
    #allocation4 [shape = 's32[1]{0}', space=sflag, size = 0x4, scoped, tag = 'scoped memory for _saliency_linear_call.1']
    %9 = vsyncpa [#allocation4], 0
    // Predicated region
    $region2: #{_saliency_linear_call.1} parent=1 // pred_check
      _
    $region3: #{_saliency_linear_call.1} parent=1 // pred_check_branch
      %11 = sbr.rel (0) target = $region5
    $region4: #{_saliency_linear_call.1} parent=1 // pred_region
      %s13 = ssub.s32 384, 384
      %14 = vsyncadd [#allocation4], %s13
      %s15 = sshll.u32 [#allocation3], 4
      %s16 = int_to_ptr.vmem [resolvable:$true] %s15
      %21 = dma.hbm_to_vmem [thread:$0]  %s0, 384, %s16, [#allocation4], 128, 128, 8
    $region5: #{_saliency_linear_call.1} parent=1 // pred_fallthru
      _
    // Predicated region
    $region6: #{_saliency_linear_call.1} parent=1 // pred_check
      _
    $region7: #{_saliency_linear_call.1} parent=1 // pred_check_branch
      %23 = sbr.rel (0) target = $region9
    $region8: #{_saliency_linear_call.1} parent=1 // pred_region
      _
    $region9: #{_saliency_linear_call.1} parent=1 // pred_fallthru
      _
    // Predicated region
    $region10: #{_saliency_linear_call.1} parent=1 // pred_check
      _
    $region11: #{_saliency_linear_call.1} parent=1 // pred_check_branch
      %25 = sbr.rel (0) target = $region13
    $region12: #{_saliency_linear_call.1} parent=1 // pred_region
      _
    $region13: #{_saliency_linear_call.1} parent=1 // pred_fallthru
      _
    // Predicated region
    $region14: #{_saliency_linear_call.1} parent=1 // pred_check
      _
    $region15: #{_saliency_linear_call.1} parent=1 // pred_check_branch
      %27 = sbr.rel (0) target = $region17
    $region16: #{_saliency_linear_call.1} parent=1 // pred_region
      %28 = dma.done [#allocation4], 384
    $region17: #{_saliency_linear_call.1} parent=1 // pred_fallthru
      _
    %v29 = vld [vmem:[#allocation3] sm:$0xff]
    %v30 = vld [vmem:[#allocation3 + $0x8] sm:$0xff]
    %v31 = vld [vmem:[#allocation3 + $0x10] sm:$0xff]
    %v32 = vld [vmem:[%s1] sm:$0x1]
    %v34 = vlaneseq
    %v35 = vshrl.u32 %v34, 7
    %v36 = vsub.s32 0, %v35
    %v37 = vrot.slane %v32, %v36
    %v39 = vmul.f32 %v29, %v37
    %v40 = vmul.f32 %v30, %v37
    %v41 = vmul.f32 %v31, %v37
    %vm42 = vcmask 261120
    %v43 = vsel %vm42, %v39, 0.0
    %44 = vadd.xlane.f32.xlu0 %v43
    %v45 = vpop.xlane.xlu0 %44
    %v46 = vsel %vm42, %v40, 0.0
    %47 = vadd.xlane.f32.xlu0 %v46
    %v48 = vpop.xlane.xlu0 %47
    %v49 = vsel %vm42, %v41, 0.0
    %50 = vadd.xlane.f32.xlu0 %v49
    %v51 = vpop.xlane.xlu0 %50
    %s52 = sld [smem:[#allocation2]]
    %v53 = vstv %s52
    %v54 = vadd.f32 %v45, %v53
    %v55 = vadd.f32 %v48, %v53
    %v56 = vadd.f32 %v51, %v53
    %vm57 = vcmask 7168
    %58 = vst.msk [vmem:[%s3] sm:$0xff] %vm57, %v54
    %59 = vst.msk [vmem:[%s3 + $0x8] sm:$0xff] %vm57, %v55
    %60 = vst.msk [vmem:[%s3 + $0x10] sm:$0xff] %vm57, %v56
    // Predicated region
    $region18: #{_saliency_linear_call.1} parent=1 // pred_check
      _
    $region19: #{_saliency_linear_call.1} parent=1 // pred_check_branch
      %62 = sbr.rel (0) target = $region21
    $region20: #{_saliency_linear_call.1} parent=1 // pred_region
      _
    $region21: #{_saliency_linear_call.1} parent=1 // pred_fallthru
      _
    // Predicated region
    $region22: #{_saliency_linear_call.1} parent=1 // pred_check
      _
    $region23: #{_saliency_linear_call.1} parent=1 // pred_check_branch
      %64 = sbr.rel (0) target = $region25
    $region24: #{_saliency_linear_call.1} parent=1 // pred_region
      _
    $region25: #{_saliency_linear_call.1} parent=1 // pred_fallthru
      _
    %65 = vsyncpa [#allocation4], 1

</llo_original>
